<compile_context>
chip_gen: v7x
topology: tpu7x:2x2x1
jax: 0.10.0
libtpu: 0.0.40
codegen_flags: <defaults>
</compile_context>

<pallas_src>
import jax
import jax.numpy as jnp
from jax.experimental import pallas as pl
from jax.experimental.pallas import tpu as pltpu


def _round_up(x, m):
    return (x + m - 1) // m * m


def _cdiv(a, b):
    return -(-a // b)


def _policy_mlp_kernel(x_ref, w1_ref, b1_ref, w2_ref, b2_ref, w3_ref, b3_ref, o_ref):
    x = x_ref[...]

    # Layer 1: bf16 operands on the MXU, f32 accumulate; bias add in f32,
    # hidden tanh in bf16 (next dot wants bf16 anyway -> cheap on v6e/v7x EUP).
    h = (
        jnp.dot(x.astype(w1_ref.dtype), w1_ref[...], preferred_element_type=jnp.float32)
        + b1_ref[...]
    )
    h = jnp.tanh(h.astype(jnp.bfloat16))

    # Layer 2.
    h = (
        jnp.dot(h, w2_ref[...], preferred_element_type=jnp.float32)
        + b2_ref[...]
    )
    h = jnp.tanh(h.astype(jnp.bfloat16))

    # Output layer at true action_dim width; final forward() squash in f32.
    out = (
        jnp.dot(h, w3_ref[...], preferred_element_type=jnp.float32)
        + b3_ref[...]
    )
    o_ref[...] = jnp.tanh(out)


def state_independent_policy_forward(states, params, *, tile_batch=8192):
    """Pallas implementation of StateIndependentPolicy.forward."""
    w1, b1, w2, b2, w3, b3 = params
    batch, state_dim = states.shape
    h1 = w1.shape[1]
    h2 = w2.shape[1]
    action_dim = w3.shape[1]

    # ---- Batch tiling: pad only to a sublane multiple (8), pick the tile adaptively
    # so the padded tail stays tiny even with a large tile cap. ----
    batch8 = _round_up(batch, 8)

    # VMEM-aware cap: double-buffered f32 in+out tiles + resident weights must stay
    # comfortably under v7x's 64 MiB VMEM (32 MiB scoped default).
    bytes_per_row = 2 * 4 * (state_dim + action_dim)        # dbl-buffered in + out, f32
    vmem_budget = 24 * 1024 * 1024
    tb_vmem_cap = max(8, (vmem_budget // bytes_per_row) // 8 * 8)
    cap = max(8, min(_round_up(tile_batch, 8), tb_vmem_cap))

    # v7x megacore: ensure >=2 parallel tiles for medium/large batches so both
    # TensorCores engage (harmless extra ~0.35us step on v5e/v6e).
    min_steps = 2 if batch8 >= 2048 else 1
    n_steps = max(min_steps, _cdiv(batch8, cap))
    tb = max(8, _round_up(_cdiv(batch8, n_steps), 8))
    n_steps = _cdiv(batch8, tb)
    padded_batch = n_steps * tb

    if padded_batch != batch:
        states = jnp.pad(states, ((0, padded_batch - batch), (0, 0)))

    itemsize = lambda a: int(a.size) * a.dtype.itemsize
    cost = pl.CostEstimate(
        flops=2 * padded_batch * (state_dim * h1 + h1 * h2 + h2 * action_dim),
        transcendentals=padded_batch * (h1 + h2 + action_dim),
        bytes_accessed=(
            itemsize(states)
            + sum(itemsize(a) for a in (w1, b1, w2, b2, w3, b3))
            + padded_batch * action_dim * 4
        ),
    )

    out = pl.pallas_call(
        _policy_mlp_kernel,
        out_shape=jax.ShapeDtypeStruct((padded_batch, action_dim), jnp.float32),
        grid=(n_steps,),
        in_specs=[
            pl.BlockSpec((tb, state_dim), lambda i: (i, 0)),     # states: tiled over batch
            pl.BlockSpec((state_dim, h1), lambda i: (0, 0)),     # weights/biases: VMEM-resident
            pl.BlockSpec((1, h1), lambda i: (0, 0)),
            pl.BlockSpec((h1, h2), lambda i: (0, 0)),
            pl.BlockSpec((1, h2), lambda i: (0, 0)),
            pl.BlockSpec((h2, action_dim), lambda i: (0, 0)),
            pl.BlockSpec((1, action_dim), lambda i: (0, 0)),
        ],
        out_specs=pl.BlockSpec((tb, action_dim), lambda i: (i, 0)),
        compiler_params=pltpu.CompilerParams(
            dimension_semantics=("parallel",),      # shard batch tiles across TCs on v7x
            vmem_limit_bytes=32 * 1024 * 1024,
        ),
        cost_estimate=cost,
    )(states, w1, b1, w2, b2, w3, b3)

    return out[:batch]


def init_params(key, state_dim, action_dim, hidden_units=(64, 64), weight_dtype=jnp.bfloat16):
    """Deterministic synthetic init mirroring nn.Linear shapes (stored as (in, out)).

    Weights are stored in bf16 (MXU-native); biases stay f32 (added to the f32 accumulator).
    """
    dims = (state_dim,) + tuple(hidden_units) + (action_dim,)
    params = []
    for fan_in, fan_out in zip(dims[:-1], dims[1:]):
        key, kw, kb = jax.random.split(key, 3)
        bound = 1.0 / (fan_in ** 0.5)
        w = jax.random.uniform(kw, (fan_in, fan_out), jnp.float32, -bound, bound)
        b = jax.random.uniform(kb, (1, fan_out), jnp.float32, -bound, bound)
        params += [w.astype(weight_dtype), b]
    # NOTE: self.log_stds (zeros(1, action_dim)) is only used in sample()/evaluate_log_pi(),
    # not in forward(), so it does not appear in the kernel.
    return tuple(params)


def reference_forward(states, params):
    """Pure-JAX reference using the same (bf16-rounded) weights, computed in f32."""
    w1, b1, w2, b2, w3, b3 = params
    h = jnp.tanh(states @ w1.astype(jnp.float32) + b1)
    h = jnp.tanh(h @ w2.astype(jnp.float32) + b2)
    return jnp.tanh(h @ w3.astype(jnp.float32) + b3)


if __name__ == "__main__":
    key = jax.random.PRNGKey(0)
    batch, state_dim, action_dim = 2, 16, 8

    key, k_states = jax.random.split(key)
    states = jax.random.normal(k_states, (batch, state_dim), jnp.float32)

    params = init_params(key, state_dim, action_dim, hidden_units=(64, 64))

    out = state_independent_policy_forward(states, params)
    out = jax.block_until_ready(out)

    ref = reference_forward(states, params)
    assert out.shape == (batch, action_dim)
    # bf16 matmul operands / bf16 hidden tanh with f32 accumulation -> loosen tolerance
    # vs the f32 reference (which itself uses the bf16-rounded weights).
    assert jnp.allclose(out, ref, atol=2e-2, rtol=2e-2), "mismatch vs reference"

    print("KERNEL_OK")
</pallas_src>

<mosaic_0001>
module attributes {stable_mosaic.version = 11 : i64} {
  func.func @_policy_mlp_kernel(%arg0: i32, %arg1: memref<8x16xf32, #tpu.memory_space<vmem>>, %arg2: memref<16x64xbf16, #tpu.memory_space<vmem>>, %arg3: memref<1x64xf32, #tpu.memory_space<vmem>>, %arg4: memref<64x64xbf16, #tpu.memory_space<vmem>>, %arg5: memref<1x64xf32, #tpu.memory_space<vmem>>, %arg6: memref<64x8xbf16, #tpu.memory_space<vmem>>, %arg7: memref<1x8xf32, #tpu.memory_space<vmem>>, %arg8: memref<8x8xf32, #tpu.memory_space<vmem>>) attributes {dimension_semantics = [#tpu.dimension_semantics<parallel>], iteration_bounds = array<i64: 1>, scalar_prefetch = 0 : i64, scratch_operands = 0 : i64, tpu.core_type = #tpu.core_type<tc>, window_params = [{transform_indices = @transform_0, window_bounds = array<i64: 8, 16>}, {pipeline_mode = #tpu.pipeline_mode<synchronous>, transform_indices = @transform_1, window_bounds = array<i64: 16, 64>}, {pipeline_mode = #tpu.pipeline_mode<synchronous>, transform_indices = @transform_2, window_bounds = array<i64: 1, 64>}, {pipeline_mode = #tpu.pipeline_mode<synchronous>, transform_indices = @transform_3, window_bounds = array<i64: 64, 64>}, {pipeline_mode = #tpu.pipeline_mode<synchronous>, transform_indices = @transform_4, window_bounds = array<i64: 1, 64>}, {pipeline_mode = #tpu.pipeline_mode<synchronous>, transform_indices = @transform_5, window_bounds = array<i64: 64, 8>}, {pipeline_mode = #tpu.pipeline_mode<synchronous>, transform_indices = @transform_6, window_bounds = array<i64: 1, 8>}, {transform_indices = @transform_7, window_bounds = array<i64: 8, 8>}]} {
    %c0 = arith.constant 0 : index
    %c0_0 = arith.constant 0 : index
    %0 = vector.load %arg1[%c0, %c0_0] : memref<8x16xf32, #tpu.memory_space<vmem>>, vector<8x16xf32>
    %1 = arith.truncf %0 : vector<8x16xf32> to vector<8x16xbf16>
    %c0_1 = arith.constant 0 : index
    %c0_2 = arith.constant 0 : index
    %2 = vector.load %arg2[%c0_1, %c0_2] : memref<16x64xbf16, #tpu.memory_space<vmem>>, vector<16x64xbf16>
    %cst = arith.constant dense<0.000000e+00> : vector<8x64xf32>
    %3 = tpu.matmul %1, %2, %cst {dimension_numbers = #tpu.dot_dimension_numbers<[1], [0], [0], [1], [0, 0, 1, 1], [], []>} : vector<8x16xbf16>, vector<16x64xbf16>, vector<8x64xf32> -> vector<8x64xf32>
    %c0_3 = arith.constant 0 : index
    %c0_4 = arith.constant 0 : index
    %4 = vector.load %arg3[%c0_3, %c0_4] : memref<1x64xf32, #tpu.memory_space<vmem>>, vector<1x64xf32>
    %5 = vector.broadcast %4 : vector<1x64xf32> to vector<8x64xf32>
    %6 = arith.addf %3, %5 : vector<8x64xf32>
    %7 = arith.truncf %6 : vector<8x64xf32> to vector<8x64xbf16>
    %8 = math.tanh %7 : vector<8x64xbf16>
    %c0_5 = arith.constant 0 : index
    %c0_6 = arith.constant 0 : index
    %9 = vector.load %arg4[%c0_5, %c0_6] : memref<64x64xbf16, #tpu.memory_space<vmem>>, vector<64x64xbf16>
    %cst_7 = arith.constant dense<0.000000e+00> : vector<8x64xf32>
    %10 = tpu.matmul %8, %9, %cst_7 {dimension_numbers = #tpu.dot_dimension_numbers<[1], [0], [0], [1], [0, 0, 1, 1], [], []>} : vector<8x64xbf16>, vector<64x64xbf16>, vector<8x64xf32> -> vector<8x64xf32>
    %c0_8 = arith.constant 0 : index
    %c0_9 = arith.constant 0 : index
    %11 = vector.load %arg5[%c0_8, %c0_9] : memref<1x64xf32, #tpu.memory_space<vmem>>, vector<1x64xf32>
    %12 = vector.broadcast %11 : vector<1x64xf32> to vector<8x64xf32>
    %13 = arith.addf %10, %12 : vector<8x64xf32>
    %14 = arith.truncf %13 : vector<8x64xf32> to vector<8x64xbf16>
    %15 = math.tanh %14 : vector<8x64xbf16>
    %c0_10 = arith.constant 0 : index
    %c0_11 = arith.constant 0 : index
    %16 = vector.load %arg6[%c0_10, %c0_11] : memref<64x8xbf16, #tpu.memory_space<vmem>>, vector<64x8xbf16>
    %cst_12 = arith.constant dense<0.000000e+00> : vector<8x8xf32>
    %17 = tpu.matmul %15, %16, %cst_12 {dimension_numbers = #tpu.dot_dimension_numbers<[1], [0], [0], [1], [0, 0, 1, 1], [], []>} : vector<8x64xbf16>, vector<64x8xbf16>, vector<8x8xf32> -> vector<8x8xf32>
    %c0_13 = arith.constant 0 : index
    %c0_14 = arith.constant 0 : index
    %18 = vector.load %arg7[%c0_13, %c0_14] : memref<1x8xf32, #tpu.memory_space<vmem>>, vector<1x8xf32>
    %19 = vector.broadcast %18 : vector<1x8xf32> to vector<8x8xf32>
    %20 = arith.addf %17, %19 : vector<8x8xf32>
    %21 = math.tanh %20 : vector<8x8xf32>
    %c0_15 = arith.constant 0 : index
    %c0_16 = arith.constant 0 : index
    %22 = vector.load %arg8[%c0_15, %c0_16] : memref<8x8xf32, #tpu.memory_space<vmem>>, vector<8x8xf32>
    tpu.vector_store %arg8[%c0_15, %c0_16], %21 {strides = array<i32>} : memref<8x8xf32, #tpu.memory_space<vmem>>, vector<8x8xf32>,
    return
  }
  func.func @transform_0(%arg0: i32) -> (i32, i32) {
    %c0_i32 = arith.constant 0 : i32
    %c0_i32_0 = arith.constant 0 : i32
    return %arg0, %c0_i32 : i32, i32
  }
  func.func @transform_1(%arg0: i32) -> (i32, i32) {
    %c0_i32 = arith.constant 0 : i32
    %c0_i32_0 = arith.constant 0 : i32
    %c0_i32_1 = arith.constant 0 : i32
    return %c0_i32, %c0_i32_0 : i32, i32
  }
  func.func @transform_2(%arg0: i32) -> (i32, i32) {
    %c0_i32 = arith.constant 0 : i32
    %c0_i32_0 = arith.constant 0 : i32
    %c0_i32_1 = arith.constant 0 : i32
    return %c0_i32, %c0_i32_0 : i32, i32
  }
  func.func @transform_3(%arg0: i32) -> (i32, i32) {
    %c0_i32 = arith.constant 0 : i32
    %c0_i32_0 = arith.constant 0 : i32
    %c0_i32_1 = arith.constant 0 : i32
    return %c0_i32, %c0_i32_0 : i32, i32
  }
  func.func @transform_4(%arg0: i32) -> (i32, i32) {
    %c0_i32 = arith.constant 0 : i32
    %c0_i32_0 = arith.constant 0 : i32
    %c0_i32_1 = arith.constant 0 : i32
    return %c0_i32, %c0_i32_0 : i32, i32
  }
  func.func @transform_5(%arg0: i32) -> (i32, i32) {
    %c0_i32 = arith.constant 0 : i32
    %c0_i32_0 = arith.constant 0 : i32
    %c0_i32_1 = arith.constant 0 : i32
    return %c0_i32, %c0_i32_0 : i32, i32
  }
  func.func @transform_6(%arg0: i32) -> (i32, i32) {
    %c0_i32 = arith.constant 0 : i32
    %c0_i32_0 = arith.constant 0 : i32
    %c0_i32_1 = arith.constant 0 : i32
    return %c0_i32, %c0_i32_0 : i32, i32
  }
  func.func @transform_7(%arg0: i32) -> (i32, i32) {
    %c0_i32 = arith.constant 0 : i32
    %c0_i32_0 = arith.constant 0 : i32
    return %arg0, %c0_i32 : i32, i32
  }
}

</mosaic_0001>

<llo_original>
// kernel: tpu_custom_call.1
$region0: #{tpu_custom_call.1}
  #allocation0 [shape = 'u32[]', space=smem, size = 0x4, offset = 0x4, fixed_abs, tag = 'smem constant byte address 0x4 - core index']
  #allocation1 [shape = 'u32[144,128]{1,0:T(1,128)}', space=vmem, size = 0x12000, scoped, tag = 'internal scratch']
  %s0 = inlined_call_operand.vmem [shape: f32[8,16], index: 0, kind: input, shape index: {}]
  %s1 = inlined_call_operand.hbm [shape: bf16[16,64], index: 1, kind: input, shape index: {}]
  %s2 = inlined_call_operand.vmem [shape: f32[1,64], index: 2, kind: input, shape index: {}]
  %s3 = inlined_call_operand.vmem [shape: bf16[64,64], index: 3, kind: input, shape index: {}]
  %s4 = inlined_call_operand.vmem [shape: f32[1,64], index: 4, kind: input, shape index: {}]
  %s5 = inlined_call_operand.vmem [shape: bf16[64,8], index: 5, kind: input, shape index: {}]
  %s6 = inlined_call_operand.vmem [shape: f32[1,8], index: 6, kind: input, shape index: {}]
  %s7 = inlined_call_operand.hbm [shape: f32[8,8], index: 7, kind: output, shape index: {}]
  %s8 = sld [smem:[#allocation0]]
  $region42: #{tpu_custom_call.1} parent=0
    _
  %s10 = ssub.s32 1, %s8
  %s11 = scalar_select 0, %s10, %s8
  $region1: #{tpu_custom_call.1} parent=0
    #allocation2 [shape = 'u8[4096]{0}', space=vmem, size = 0x1000, scoped, tag = 'input window, operand 1, single buffered']
    #allocation3 [shape = 's32[1]{0}', space=sflag, size = 0x4, scoped, tag = 'scoped memory for tpu_custom_call.1']
    #allocation4 [shape = 's32[1]{0}', space=sflag, size = 0x4, scoped, tag = 'scoped memory for tpu_custom_call.1']
    #allocation5 [shape = 'u8[4096]{0}', space=vmem, size = 0x1000, scoped, tag = 'output window, operand 0, single buffered']
    %12 = vsyncpa [#allocation3], 0
    %13 = vsyncpa [#allocation4], 0
    // Predicated region
    $region2: #{tpu_custom_call.1} parent=1 // pred_check
      _
    $region3: #{tpu_custom_call.1} parent=1 // pred_check_branch
      %15 = sbr.rel (0) target = $region5
    $region4: #{tpu_custom_call.1} parent=1 // pred_region
      _
    $region5: #{tpu_custom_call.1} parent=1 // pred_fallthru
      _
    // Predicated region
    $region6: #{tpu_custom_call.1} parent=1 // pred_check
      _
    $region7: #{tpu_custom_call.1} parent=1 // pred_check_branch
      %17 = sbr.rel (0) target = $region9
    $region8: #{tpu_custom_call.1} parent=1 // pred_region
      %s19 = ssub.s32 128, 128
      %20 = vsyncadd [#allocation3], %s19
      %s21 = sshll.u32 [#allocation2], 4
      %s22 = int_to_ptr.vmem [resolvable:$true] %s21
      %27 = dma.hbm_to_vmem [thread:$0]  %s1, 128, %s22, [#allocation3], 64, 64, 4
    $region9: #{tpu_custom_call.1} parent=1 // pred_fallthru
      _
    // Predicated region
    $region10: #{tpu_custom_call.1} parent=1 // pred_check
      _
    $region11: #{tpu_custom_call.1} parent=1 // pred_check_branch
      %29 = sbr.rel (0) target = $region13
    $region12: #{tpu_custom_call.1} parent=1 // pred_region
      _
    $region13: #{tpu_custom_call.1} parent=1 // pred_fallthru
      _
    // Predicated region
    $region14: #{tpu_custom_call.1} parent=1 // pred_check
      _
    $region15: #{tpu_custom_call.1} parent=1 // pred_check_branch
      %31 = sbr.rel (0) target = $region17
    $region16: #{tpu_custom_call.1} parent=1 // pred_region
      _
    $region17: #{tpu_custom_call.1} parent=1 // pred_fallthru
      _
    // Predicated region
    $region18: #{tpu_custom_call.1} parent=1 // pred_check
      _
    $region19: #{tpu_custom_call.1} parent=1 // pred_check_branch
      %33 = sbr.rel (0) target = $region21
    $region20: #{tpu_custom_call.1} parent=1 // pred_region
      _
    $region21: #{tpu_custom_call.1} parent=1 // pred_fallthru
      _
    // Predicated region
    $region22: #{tpu_custom_call.1} parent=1 // pred_check
      _
    $region23: #{tpu_custom_call.1} parent=1 // pred_check_branch
      %35 = sbr.rel (0) target = $region25
    $region24: #{tpu_custom_call.1} parent=1 // pred_region
      _
    $region25: #{tpu_custom_call.1} parent=1 // pred_fallthru
      _
    // Predicated region
    $region26: #{tpu_custom_call.1} parent=1 // pred_check
      _
    $region27: #{tpu_custom_call.1} parent=1 // pred_check_branch
      %37 = sbr.rel (0) target = $region29
    $region28: #{tpu_custom_call.1} parent=1 // pred_region
      _
    $region29: #{tpu_custom_call.1} parent=1 // pred_fallthru
      _
    // Predicated region
    $region30: #{tpu_custom_call.1} parent=1 // pred_check
      _
    $region31: #{tpu_custom_call.1} parent=1 // pred_check_branch
      %39 = sbr.rel (0) target = $region33
    $region32: #{tpu_custom_call.1} parent=1 // pred_region
      %40 = dma.done [#allocation3], 128
    $region33: #{tpu_custom_call.1} parent=1 // pred_fallthru
      _
    %v42 = vld [vmem:[%s0] sm:$0xff]
    %v43 = vpack.c.bf16 %v42, %v42
    %v44 = vld [vmem:[#allocation2] sm:$0xf]
    %v45 = vld [vmem:[#allocation2 + $0x4] sm:$0xf]
    %v46 = vld [vmem:[%s2] sm:$0x1]
    %v48 = vlaneseq
    %v49 = vshrl.u32 %v48, 7
    %v50 = vsub.s32 0, %v49
    %v51 = vrot.slane %v46, %v50
    %v55 = vunpack.c.l.b16 %v44
    %v56 = vunpack.c.l.b16 %v45
    %v57 = vpack.c.b16 %v56, %v55
    %vm59 = vcmask 130048
    %v61 = vsel %vm59, %v43, 0
    %63 = vmatprep.subr.bf16.mxu0 0
    %64 = vmatpush1.bf16.msra.mxu0 %v57
    %65 = vmatprep.subr.bf16.mxu0 0
    %66 = vmatpush1.bf16.msra.mxu0 0
    %67 = vmatprep.subr.bf16.mxu0 0
    %68 = vmatpush1.bf16.msra.mxu0 0
    %69 = vmatprep.subr.bf16.mxu0 0
    %70 = vmatpush1.bf16.msra.mxu0 0
    %71 = vmatprep.subr.bf16.mxu0 0
    %72 = vmatpush1.bf16.msra.mxu0 0
    %73 = vmatprep.subr.bf16.mxu0 0
    %74 = vmatpush1.bf16.msra.mxu0 0
    %75 = vmatprep.subr.bf16.mxu0 0
    %76 = vmatpush1.bf16.msra.mxu0 0
    %77 = vmatprep.subr.bf16.mxu0 0
    %78 = vmatpush1.bf16.msra.mxu0 0
    %79 = vmatprep.subr.bf16.mxu0 0
    %80 = vmatpush1.bf16.msra.mxu0 0
    %81 = vmatprep.subr.bf16.mxu0 0
    %82 = vmatpush1.bf16.msra.mxu0 0
    %83 = vmatprep.subr.bf16.mxu0 0
    %84 = vmatpush1.bf16.msra.mxu0 0
    %85 = vmatprep.subr.bf16.mxu0 0
    %86 = vmatpush1.bf16.msra.mxu0 0
    %87 = vmatprep.subr.bf16.mxu0 0
    %88 = vmatpush1.bf16.msra.mxu0 0
    %89 = vmatprep.subr.bf16.mxu0 0
    %90 = vmatpush1.bf16.msra.mxu0 0
    %91 = vmatprep.subr.bf16.mxu0 0
    %92 = vmatpush1.bf16.msra.mxu0 0
    %93 = vmatprep.subr.bf16.mxu0 0
    %94 = vmatpush1.bf16.msra.mxu0 0
    %95 = vmatprep.mubr.bf16.mxu0 0
    %96 = vmatmul.mubr.bf16.gmra.mrb[0].mxu0 %v61
    %v97 = vpop.f32.mrb[0].mxu0
    %v98 = vadd.f32 %v51, %v97
    %v99 = vpop.f32.mrb[0].mxu0
    %v100 = vpop.f32.mrb[0].mxu0
    %v101 = vpop.f32.mrb[0].mxu0
    %102 = vdwg.mxu0
    %v103 = vpack.c.bf16 %v98, %v98
    %v104 = vtanh.bf16.pop %v103
    %v105 = vld [vmem:[%s3] sm:$0xf]
    %v106 = vld [vmem:[%s3 + $0x4] sm:$0xf]
    %v107 = vld [vmem:[%s3 + $0x8] sm:$0xf]
    %v108 = vld [vmem:[%s3 + $0xc] sm:$0xf]
    %v109 = vld [vmem:[%s3 + $0x10] sm:$0xf]
    %v110 = vld [vmem:[%s3 + $0x14] sm:$0xf]
    %v111 = vld [vmem:[%s3 + $0x18] sm:$0xf]
    %v112 = vld [vmem:[%s3 + $0x1c] sm:$0xf]
    %v113 = vld [vmem:[%s4] sm:$0x1]
    %v115 = vlaneseq
    %v116 = vshrl.u32 %v115, 7
    %v117 = vsub.s32 0, %v116
    %v118 = vrot.slane %v113, %v117
    %v128 = vunpack.c.l.b16 %v105
    %v129 = vunpack.c.l.b16 %v106
    %v130 = vunpack.c.l.b16 %v107
    %v131 = vunpack.c.l.b16 %v108
    %v132 = vunpack.c.l.b16 %v109
    %v133 = vunpack.c.l.b16 %v110
    %v134 = vunpack.c.l.b16 %v111
    %v135 = vunpack.c.l.b16 %v112
    %v136 = vpack.c.b16 %v129, %v128
    %v137 = vpack.c.b16 %v131, %v130
    %v138 = vpack.c.b16 %v133, %v132
    %v139 = vpack.c.b16 %v135, %v134
    %vm144 = vcmask 523264
    %v146 = vsel %vm144, %v104, 0
    %148 = vmatprep.subr.bf16.mxu0 0
    %149 = vmatpush1.bf16.msra.mxu0 %v136
    %150 = vmatprep.subr.bf16.mxu0 0
    %151 = vmatpush1.bf16.msra.mxu0 %v137
    %152 = vmatprep.subr.bf16.mxu0 0
    %153 = vmatpush1.bf16.msra.mxu0 %v138
    %154 = vmatprep.subr.bf16.mxu0 0
    %155 = vmatpush1.bf16.msra.mxu0 %v139
    %156 = vmatprep.subr.bf16.mxu0 0
    %157 = vmatpush1.bf16.msra.mxu0 0
    %158 = vmatprep.subr.bf16.mxu0 0
    %159 = vmatpush1.bf16.msra.mxu0 0
    %160 = vmatprep.subr.bf16.mxu0 0
    %161 = vmatpush1.bf16.msra.mxu0 0
    %162 = vmatprep.subr.bf16.mxu0 0
    %163 = vmatpush1.bf16.msra.mxu0 0
    %164 = vmatprep.subr.bf16.mxu0 0
    %165 = vmatpush1.bf16.msra.mxu0 0
    %166 = vmatprep.subr.bf16.mxu0 0
    %167 = vmatpush1.bf16.msra.mxu0 0
    %168 = vmatprep.subr.bf16.mxu0 0
    %169 = vmatpush1.bf16.msra.mxu0 0
    %170 = vmatprep.subr.bf16.mxu0 0
    %171 = vmatpush1.bf16.msra.mxu0 0
    %172 = vmatprep.subr.bf16.mxu0 0
    %173 = vmatpush1.bf16.msra.mxu0 0
    %174 = vmatprep.subr.bf16.mxu0 0
    %175 = vmatpush1.bf16.msra.mxu0 0
    %176 = vmatprep.subr.bf16.mxu0 0
    %177 = vmatpush1.bf16.msra.mxu0 0
    %178 = vmatprep.subr.bf16.mxu0 0
    %179 = vmatpush1.bf16.msra.mxu0 0
    %180 = vmatprep.mubr.bf16.mxu0 0
    %181 = vmatmul.mubr.bf16.gmra.mrb[0].mxu0 %v146
    %v182 = vpop.f32.mrb[0].mxu0
    %v183 = vadd.f32 %v118, %v182
    %v184 = vpop.f32.mrb[0].mxu0
    %v185 = vpop.f32.mrb[0].mxu0
    %v186 = vpop.f32.mrb[0].mxu0
    %187 = vdwg.mxu0
    %v188 = vpack.c.bf16 %v183, %v183
    %v189 = vtanh.bf16.pop %v188
    %v190 = vld [vmem:[%s5] sm:$0xf]
    %v191 = vld [vmem:[%s5 + $0x4] sm:$0xf]
    %v192 = vld [vmem:[%s5 + $0x8] sm:$0xf]
    %v193 = vld [vmem:[%s5 + $0xc] sm:$0xf]
    %v194 = vld [vmem:[%s5 + $0x10] sm:$0xf]
    %v195 = vld [vmem:[%s5 + $0x14] sm:$0xf]
    %v196 = vld [vmem:[%s5 + $0x18] sm:$0xf]
    %v197 = vld [vmem:[%s5 + $0x1c] sm:$0xf]
    %v198 = vld [vmem:[%s6] sm:$0x1]
    %v200 = vlaneseq
    %v201 = vshrl.u32 %v200, 7
    %v202 = vsub.s32 0, %v201
    %v203 = vrot.slane %v198, %v202
    %v213 = vunpack.c.l.b16 %v190
    %v214 = vunpack.c.l.b16 %v191
    %v215 = vunpack.c.l.b16 %v192
    %v216 = vunpack.c.l.b16 %v193
    %v217 = vunpack.c.l.b16 %v194
    %v218 = vunpack.c.l.b16 %v195
    %v219 = vunpack.c.l.b16 %v196
    %v220 = vunpack.c.l.b16 %v197
    %v221 = vpack.c.b16 %v214, %v213
    %v222 = vpack.c.b16 %v216, %v215
    %v223 = vpack.c.b16 %v218, %v217
    %v224 = vpack.c.b16 %v220, %v219
    %v230 = vsel %vm144, %v189, 0
    %232 = vmatprep.subr.bf16.mxu0 0
    %233 = vmatpush1.bf16.msra.mxu0 %v221
    %234 = vmatprep.subr.bf16.mxu0 0
    %235 = vmatpush1.bf16.msra.mxu0 %v222
    %236 = vmatprep.subr.bf16.mxu0 0
    %237 = vmatpush1.bf16.msra.mxu0 %v223
    %238 = vmatprep.subr.bf16.mxu0 0
    %239 = vmatpush1.bf16.msra.mxu0 %v224
    %240 = vmatprep.subr.bf16.mxu0 0
    %241 = vmatpush1.bf16.msra.mxu0 0
    %242 = vmatprep.subr.bf16.mxu0 0
    %243 = vmatpush1.bf16.msra.mxu0 0
    %244 = vmatprep.subr.bf16.mxu0 0
    %245 = vmatpush1.bf16.msra.mxu0 0
    %246 = vmatprep.subr.bf16.mxu0 0
    %247 = vmatpush1.bf16.msra.mxu0 0
    %248 = vmatprep.subr.bf16.mxu0 0
    %249 = vmatpush1.bf16.msra.mxu0 0
    %250 = vmatprep.subr.bf16.mxu0 0
    %251 = vmatpush1.bf16.msra.mxu0 0
    %252 = vmatprep.subr.bf16.mxu0 0
    %253 = vmatpush1.bf16.msra.mxu0 0
    %254 = vmatprep.subr.bf16.mxu0 0
    %255 = vmatpush1.bf16.msra.mxu0 0
    %256 = vmatprep.subr.bf16.mxu0 0
    %257 = vmatpush1.bf16.msra.mxu0 0
    %258 = vmatprep.subr.bf16.mxu0 0
    %259 = vmatpush1.bf16.msra.mxu0 0
    %260 = vmatprep.subr.bf16.mxu0 0
    %261 = vmatpush1.bf16.msra.mxu0 0
    %262 = vmatprep.subr.bf16.mxu0 0
    %263 = vmatpush1.bf16.msra.mxu0 0
    %264 = vmatprep.mubr.bf16.mxu0 0
    %265 = vmatmul.mubr.bf16.gmra.mrb[0].mxu0 %v230
    %v266 = vpop.f32.mrb[0].mxu0
    %v267 = vadd.f32 %v203, %v266
    %v268 = vpop.f32.mrb[0].mxu0
    %v269 = vpop.f32.mrb[0].mxu0
    %v270 = vpop.f32.mrb[0].mxu0
    %271 = vdwg.mxu0
    %v272 = vtanh.pop %v267
    %vm273 = vcmask 64512
    %274 = vst.msk [vmem:[#allocation5] sm:$0xff] %vm273, %v272
    // Predicated region
    $region34: #{tpu_custom_call.1} parent=1 // pred_check
      _
    $region35: #{tpu_custom_call.1} parent=1 // pred_check_branch
      %276 = sbr.rel (0) target = $region37
    $region36: #{tpu_custom_call.1} parent=1 // pred_region
      %s278 = ssub.s32 128, 128
      %279 = vsyncadd [#allocation4], %s278
      %s281 = sshll.u32 [#allocation5], 4
      %s282 = int_to_ptr.vmem [resolvable:$true] %s281
      %284 = dma.vmem_to_hbm [thread:$0]  %s282, 128, %s7, [#allocation4]
    $region37: #{tpu_custom_call.1} parent=1 // pred_fallthru
      _
    // Predicated region
    $region38: #{tpu_custom_call.1} parent=1 // pred_check
      _
    $region39: #{tpu_custom_call.1} parent=1 // pred_check_branch
      %286 = sbr.rel (0) target = $region41
    $region40: #{tpu_custom_call.1} parent=1 // pred_region
      %287 = dma.done [#allocation4], 128
    $region41: #{tpu_custom_call.1} parent=1 // pred_fallthru
      _
    %288 = vsyncpa [#allocation3], 1
    %289 = vsyncpa [#allocation4], 1

</llo_original>
